<compile_context>
chip_gen: v5e
topology: v5e:2x2
jax: 0.10.0
libtpu: 0.0.40
codegen_flags: <defaults>
</compile_context>

<pallas_src>
import functools

import jax
import jax.numpy as jnp
from jax.experimental import pallas as pl
from jax.experimental.pallas import tpu as pltpu


def _flex_encoding_kernel(*refs, hidden_layer_num: int, hidden_dim: int,
                          emb_dim: int, use_second_network: bool,
                          first_main_width: int):
    # Unpack refs according to the static config.
    x_ref, wb_first_ref = refs[0], refs[1]
    pos = 2
    wb_rest_ref = None
    if hidden_layer_num != 0:
        wb_rest_ref = refs[pos]
        pos += 1
    y_ref = refs[pos]
    pos += 1
    v_ref = refs[pos] if use_second_network else None

    x = x_ref[...]                               # (tb, E), compute dtype
    wb_first = wb_first_ref[...]                 # (E+1, C1): weights + bias row
    E = emb_dim
    w_first = wb_first[:E, :]
    b_first = wb_first[E:E + 1, :]

    # One fused MXU pass for [fc2 | fc5] (or [fc1 | fc5]); the shared bias row is
    # a single broadcast VPU add (no separate bias DMA, no x augmentation).
    res = jnp.dot(x, w_first, preferred_element_type=jnp.float32) + b_first

    main = res[:, :first_main_width]             # fc2 (or fc1) pre-activation, f32

    if hidden_layer_num != 0:
        H = hidden_dim
        h = jnp.maximum(main, 0.0)               # ReLU in f32
        wb_rest = wb_rest_ref[...]               # (H+1, H+1) or (H+1, 1), loaded once
        if hidden_layer_num > 1:
            # Hoisted slices, reused across the unrolled loop (no per-iter reload).
            w3 = wb_rest[:H, :H]
            b3 = wb_rest[H:H + 1, :H]
            w4 = wb_rest[:H, H:H + 1]
            b4 = wb_rest[H:H + 1, H:H + 1]
            for _ in range(hidden_layer_num - 1):
                h = jnp.dot(h.astype(x.dtype), w3,
                            preferred_element_type=jnp.float32) + b3
                h = jnp.maximum(h, 0.0)
        else:
            w4 = wb_rest[:H, :]
            b4 = wb_rest[H:H + 1, :]
        out = jnp.dot(h.astype(x.dtype), w4,
                      preferred_element_type=jnp.float32) + b4    # (tb, 1)
    else:
        out = main                                                # fc1 path, (tb, 1)

    # repeat_interleave(x, lag, dim=-1) on a width-1 x is exactly a lane
    # broadcast; fuse it into the output store.
    y_ref[...] = jnp.broadcast_to(out, y_ref.shape).astype(y_ref.dtype)

    if use_second_network:
        logits = res[:, first_main_width:]       # fc5 logits, f32
        m = jnp.max(logits, axis=-1, keepdims=True)
        e = jnp.exp(logits - m)
        denom = jnp.sum(e, axis=-1, keepdims=True)
        # approx=True -> EUP vrcp (otherwise-idle slot) instead of a VALU divide.
        v_ref[...] = (e * pl.reciprocal(denom, approx=True)).astype(v_ref.dtype)


def pack_params(params, *, hidden_layer_num: int, use_second_network: bool,
                compute_dtype=jnp.float32):
    """Pack the (up to) 10 Linear tensors into 1-2 blobs (done once, host side).

    wb_first : (E+1, C1) = [[w_main | w5], [b_main | b5]]   (w5/b5 only if used)
    wb_rest  : (H+1, H+1) = [[w3, w4], [b3, b4]]            (if hidden_layer_num > 1)
               (H+1, 1)   = [w4; b4]                        (if hidden_layer_num == 1)
    Statically unused weights are simply not packed / not DMA'd.
    """
    if hidden_layer_num != 0:
        w_main, b_main = params["w2"], params["b2"]
    else:
        w_main, b_main = params["w1"], params["b1"]
    first_main_width = int(w_main.shape[1])

    if use_second_network:
        w_first = jnp.concatenate([w_main, params["w5"]], axis=1)
        b_first = jnp.concatenate([b_main, params["b5"]], axis=1)
    else:
        w_first, b_first = w_main, b_main
    wb_first = jnp.concatenate([w_first, b_first], axis=0).astype(compute_dtype)

    packed = dict(
        wb_first=wb_first,
        first_main_width=first_main_width,
        hidden_dim=int(params["w2"].shape[1]),
        compute_dtype=compute_dtype,
    )
    if hidden_layer_num > 1:
        left = jnp.concatenate([params["w3"], params["b3"]], axis=0)     # (H+1, H)
        right = jnp.concatenate([params["w4"], params["b4"]], axis=0)    # (H+1, 1)
        packed["wb_rest"] = jnp.concatenate([left, right], axis=1).astype(compute_dtype)
    elif hidden_layer_num == 1:
        packed["wb_rest"] = jnp.concatenate(
            [params["w4"], params["b4"]], axis=0).astype(compute_dtype)  # (H+1, 1)
    return packed


def flex_encoding_forward(x1, packed, *, hidden_layer_num: int, lag_number: int,
                          use_second_network: bool, block_b: int = 512):
    """Pallas implementation of flex_encoding.forward (takes pre-packed params)."""
    B, E = x1.shape
    L = lag_number
    H = packed["hidden_dim"]
    compute_dtype = packed["compute_dtype"]

    operands = [x1.astype(compute_dtype), packed["wb_first"]]
    if hidden_layer_num != 0:
        operands.append(packed["wb_rest"])

    # Batch tiling: single block at small B; parallel grid (both TCs on v7x) and
    # bounded VMEM if B ever scales.
    tb = B if B <= block_b else block_b
    grid = (pl.cdiv(B, tb),)

    def full_spec(shape):
        return pl.BlockSpec(shape, lambda i: (0,) * len(shape))

    in_specs = [pl.BlockSpec((tb, E), lambda i: (i, 0)),
                full_spec(packed["wb_first"].shape)]
    if hidden_layer_num != 0:
        in_specs.append(full_spec(packed["wb_rest"].shape))

    y_spec = pl.BlockSpec((tb, L), lambda i: (i, 0))
    y_struct = jax.ShapeDtypeStruct((B, L), jnp.float32)
    if use_second_network:
        out_shape = (y_struct, jax.ShapeDtypeStruct((B, L), jnp.float32))
        out_specs = (y_spec, pl.BlockSpec((tb, L), lambda i: (i, 0)))
    else:
        out_shape = y_struct
        out_specs = y_spec

    kernel = functools.partial(
        _flex_encoding_kernel,
        hidden_layer_num=hidden_layer_num,
        hidden_dim=H,
        emb_dim=E,
        use_second_network=use_second_network,
        first_main_width=packed["first_main_width"],
    )

    return pl.pallas_call(
        kernel,
        out_shape=out_shape,
        grid=grid,
        in_specs=in_specs,
        out_specs=out_specs,
        compiler_params=pltpu.CompilerParams(dimension_semantics=("parallel",)),
    )(*operands)


def init_params(key, emb_dim, hidden_layer_dim, lag_number):
    """Deterministic init mimicking nn.Linear shapes (stored transposed: (in, out))."""
    ks = jax.random.split(key, 10)

    def lin(kw, kb, fan_in, fan_out):
        bound = 1.0 / jnp.sqrt(fan_in)
        w = jax.random.uniform(kw, (fan_in, fan_out), jnp.float32, -bound, bound)
        b = jax.random.uniform(kb, (1, fan_out), jnp.float32, -bound, bound)
        return w, b

    w1, b1 = lin(ks[0], ks[1], emb_dim, 1)
    w2, b2 = lin(ks[2], ks[3], emb_dim, hidden_layer_dim)
    w3, b3 = lin(ks[4], ks[5], hidden_layer_dim, hidden_layer_dim)
    w4, b4 = lin(ks[6], ks[7], hidden_layer_dim, 1)
    w5, b5 = lin(ks[8], ks[9], emb_dim, lag_number)
    return dict(w1=w1, b1=b1, w2=w2, b2=b2, w3=w3, b3=b3,
                w4=w4, b4=b4, w5=w5, b5=b5)


def _ref_forward(x1, params, *, hidden_layer_num, lag_number, use_second_network):
    """Pure-JAX reference matching the PyTorch forward."""
    B = x1.shape[0]
    if hidden_layer_num != 0:
        h = jnp.maximum(x1 @ params["w2"] + params["b2"], 0.0)
        for _ in range(hidden_layer_num - 1):
            h = jnp.maximum(h @ params["w3"] + params["b3"], 0.0)
        out = h @ params["w4"] + params["b4"]
    else:
        out = x1 @ params["w1"] + params["b1"]
    y = jnp.broadcast_to(out, (B, lag_number))
    if use_second_network:
        v = jax.nn.softmax(x1 @ params["w5"] + params["b5"], axis=1)
        return y, v
    return y


if __name__ == "__main__":
    emb_dim = 32
    hidden_layer_dim = 32
    lag_number = 8
    batch = 8

    key = jax.random.PRNGKey(0)
    k_x, k_p = jax.random.split(key)
    x1 = jax.random.normal(k_x, (batch, emb_dim), jnp.float32)
    params = init_params(k_p, emb_dim, hidden_layer_dim, lag_number)

    # --- Config 1 (main): hidden_layer_num=2, use_second_network=True, f32 ---
    cfg = dict(hidden_layer_num=2, lag_number=lag_number, use_second_network=True)
    packed = pack_params(params, hidden_layer_num=cfg["hidden_layer_num"],
                         use_second_network=cfg["use_second_network"])
    y_pred, v = flex_encoding_forward(x1, packed, **cfg)
    jax.block_until_ready((y_pred, v))
    y_ref, v_ref = _ref_forward(x1, params, **cfg)
    assert jnp.allclose(y_pred, y_ref, atol=1e-5), "y_pred mismatch (cfg1)"
    assert jnp.allclose(v, v_ref, atol=2e-3), "v mismatch (cfg1)"  # approx reciprocal

    # --- Config 2: hidden_layer_num=0 (fc1 path), no second network, f32 ---
    cfg = dict(hidden_layer_num=0, lag_number=lag_number, use_second_network=False)
    packed = pack_params(params, hidden_layer_num=cfg["hidden_layer_num"],
                         use_second_network=cfg["use_second_network"])
    y_pred = flex_encoding_forward(x1, packed, **cfg)
    jax.block_until_ready(y_pred)
    y_ref = _ref_forward(x1, params, **cfg)
    assert jnp.allclose(y_pred, y_ref, atol=1e-5), "y_pred mismatch (cfg2)"

    # --- Config 3: hidden_layer_num=1, second network, bf16 operands (v6e/v7x) ---
    cfg = dict(hidden_layer_num=1, lag_number=lag_number, use_second_network=True)
    packed = pack_params(params, hidden_layer_num=cfg["hidden_layer_num"],
                         use_second_network=cfg["use_second_network"],
                         compute_dtype=jnp.bfloat16)
    y_pred, v = flex_encoding_forward(x1, packed, **cfg)
    jax.block_until_ready((y_pred, v))
    y_ref, v_ref = _ref_forward(x1, params, **cfg)
    assert jnp.allclose(y_pred, y_ref, atol=1e-1, rtol=1e-1), "y_pred mismatch (cfg3/bf16)"
    assert jnp.allclose(v, v_ref, atol=1e-1), "v mismatch (cfg3/bf16)"

    print("KERNEL_OK")
</pallas_src>

<mosaic_0001>
module attributes {stable_mosaic.version = 11 : i64} {
  func.func @_flex_encoding_kernel(%arg0: i32, %arg1: memref<8x32xf32, #tpu.memory_space<vmem>>, %arg2: memref<33x40xf32, #tpu.memory_space<vmem>>, %arg3: memref<33x33xf32, #tpu.memory_space<vmem>>, %arg4: memref<8x8xf32, #tpu.memory_space<vmem>>, %arg5: memref<8x8xf32, #tpu.memory_space<vmem>>) attributes {dimension_semantics = [#tpu.dimension_semantics<parallel>], iteration_bounds = array<i64: 1>, scalar_prefetch = 0 : i64, scratch_operands = 0 : i64, tpu.core_type = #tpu.core_type<tc>, window_params = [{transform_indices = @transform_0, window_bounds = array<i64: 8, 32>}, {pipeline_mode = #tpu.pipeline_mode<synchronous>, transform_indices = @transform_1, window_bounds = array<i64: 33, 40>}, {pipeline_mode = #tpu.pipeline_mode<synchronous>, transform_indices = @transform_2, window_bounds = array<i64: 33, 33>}, {transform_indices = @transform_3, window_bounds = array<i64: 8, 8>}, {transform_indices = @transform_4, window_bounds = array<i64: 8, 8>}]} {
    %c0 = arith.constant 0 : index
    %c0_0 = arith.constant 0 : index
    %0 = vector.load %arg1[%c0, %c0_0] : memref<8x32xf32, #tpu.memory_space<vmem>>, vector<8x32xf32>
    %c0_1 = arith.constant 0 : index
    %c0_2 = arith.constant 0 : index
    %1 = vector.load %arg2[%c0_1, %c0_2] : memref<33x40xf32, #tpu.memory_space<vmem>>, vector<33x40xf32>
    %2 = vector.extract_strided_slice %1 {offsets = [0, 0], sizes = [32, 40], strides = [1, 1]} : vector<33x40xf32> to vector<32x40xf32>
    %3 = vector.extract_strided_slice %1 {offsets = [32, 0], sizes = [1, 40], strides = [1, 1]} : vector<33x40xf32> to vector<1x40xf32>
    %cst = arith.constant dense<0.000000e+00> : vector<8x40xf32>
    %4 = tpu.matmul %0, %2, %cst {dimension_numbers = #tpu.dot_dimension_numbers<[1], [0], [0], [1], [0, 0, 1, 1], [], []>} : vector<8x32xf32>, vector<32x40xf32>, vector<8x40xf32> -> vector<8x40xf32>
    %5 = vector.broadcast %3 : vector<1x40xf32> to vector<8x40xf32>
    %6 = arith.addf %4, %5 : vector<8x40xf32>
    %7 = vector.extract_strided_slice %6 {offsets = [0, 0], sizes = [8, 32], strides = [1, 1]} : vector<8x40xf32> to vector<8x32xf32>
    %cst_3 = arith.constant 0.000000e+00 : f32
    %8 = vector.broadcast %cst_3 : f32 to vector<8x32xf32>
    %9 = arith.maximumf %7, %8 : vector<8x32xf32>
    %c0_4 = arith.constant 0 : index
    %c0_5 = arith.constant 0 : index
    %10 = vector.load %arg3[%c0_4, %c0_5] : memref<33x33xf32, #tpu.memory_space<vmem>>, vector<33x33xf32>
    %11 = vector.extract_strided_slice %10 {offsets = [0, 0], sizes = [32, 32], strides = [1, 1]} : vector<33x33xf32> to vector<32x32xf32>
    %12 = vector.extract_strided_slice %10 {offsets = [32, 0], sizes = [1, 32], strides = [1, 1]} : vector<33x33xf32> to vector<1x32xf32>
    %13 = vector.extract_strided_slice %10 {offsets = [0, 32], sizes = [32, 1], strides = [1, 1]} : vector<33x33xf32> to vector<32x1xf32>
    %14 = vector.extract_strided_slice %10 {offsets = [32, 32], sizes = [1, 1], strides = [1, 1]} : vector<33x33xf32> to vector<1x1xf32>
    %cst_6 = arith.constant dense<0.000000e+00> : vector<8x32xf32>
    %15 = tpu.matmul %9, %11, %cst_6 {dimension_numbers = #tpu.dot_dimension_numbers<[1], [0], [0], [1], [0, 0, 1, 1], [], []>} : vector<8x32xf32>, vector<32x32xf32>, vector<8x32xf32> -> vector<8x32xf32>
    %16 = vector.broadcast %12 : vector<1x32xf32> to vector<8x32xf32>
    %17 = arith.addf %15, %16 : vector<8x32xf32>
    %cst_7 = arith.constant 0.000000e+00 : f32
    %18 = vector.broadcast %cst_7 : f32 to vector<8x32xf32>
    %19 = arith.maximumf %17, %18 : vector<8x32xf32>
    %cst_8 = arith.constant dense<0.000000e+00> : vector<8x1xf32>
    %20 = tpu.matmul %19, %13, %cst_8 {dimension_numbers = #tpu.dot_dimension_numbers<[1], [0], [0], [1], [0, 0, 1, 1], [], []>} : vector<8x32xf32>, vector<32x1xf32>, vector<8x1xf32> -> vector<8x1xf32>
    %21 = vector.broadcast %14 : vector<1x1xf32> to vector<8x1xf32>
    %22 = arith.addf %20, %21 : vector<8x1xf32>
    %23 = vector.shape_cast %22 : vector<8x1xf32> to vector<8x1xf32>
    %24 = vector.broadcast %23 : vector<8x1xf32> to vector<8x8xf32>
    %c0_9 = arith.constant 0 : index
    %c0_10 = arith.constant 0 : index
    %25 = vector.load %arg4[%c0_9, %c0_10] : memref<8x8xf32, #tpu.memory_space<vmem>>, vector<8x8xf32>
    tpu.vector_store %arg4[%c0_9, %c0_10], %24 {strides = array<i32>} : memref<8x8xf32, #tpu.memory_space<vmem>>, vector<8x8xf32>,
    %26 = vector.extract_strided_slice %6 {offsets = [0, 32], sizes = [8, 8], strides = [1, 1]} : vector<8x40xf32> to vector<8x8xf32>
    %cst_11 = arith.constant dense<0xFF800000> : vector<8xf32>
    %27 = vector.multi_reduction <maximumf>, %26, %cst_11 [1] : vector<8x8xf32> to vector<8xf32>
    %28 = vector.shape_cast %27 : vector<8xf32> to vector<8x1xf32>
    %29 = vector.broadcast %28 : vector<8x1xf32> to vector<8x8xf32>
    %30 = arith.subf %26, %29 : vector<8x8xf32>
    %31 = math.exp %30 : vector<8x8xf32>
    %cst_12 = arith.constant dense<0.000000e+00> : vector<8xf32>
    %32 = vector.multi_reduction <add>, %31, %cst_12 [1] : vector<8x8xf32> to vector<8xf32>
    %33 = vector.shape_cast %32 : vector<8xf32> to vector<8x1xf32>
    %34 = tpu.reciprocal %33 {approx = true} : vector<8x1xf32> -> vector<8x1xf32>
    %35 = vector.broadcast %34 : vector<8x1xf32> to vector<8x8xf32>
    %36 = arith.mulf %31, %35 : vector<8x8xf32>
    %c0_13 = arith.constant 0 : index
    %c0_14 = arith.constant 0 : index
    %37 = vector.load %arg5[%c0_13, %c0_14] : memref<8x8xf32, #tpu.memory_space<vmem>>, vector<8x8xf32>
    tpu.vector_store %arg5[%c0_13, %c0_14], %36 {strides = array<i32>} : memref<8x8xf32, #tpu.memory_space<vmem>>, vector<8x8xf32>,
    return
  }
  func.func @transform_0(%arg0: i32) -> (i32, i32) {
    %c0_i32 = arith.constant 0 : i32
    %c0_i32_0 = arith.constant 0 : i32
    return %arg0, %c0_i32 : i32, i32
  }
  func.func @transform_1(%arg0: i32) -> (i32, i32) {
    %c0_i32 = arith.constant 0 : i32
    %c0_i32_0 = arith.constant 0 : i32
    %c0_i32_1 = arith.constant 0 : i32
    return %c0_i32, %c0_i32_0 : i32, i32
  }
  func.func @transform_2(%arg0: i32) -> (i32, i32) {
    %c0_i32 = arith.constant 0 : i32
    %c0_i32_0 = arith.constant 0 : i32
    %c0_i32_1 = arith.constant 0 : i32
    return %c0_i32, %c0_i32_0 : i32, i32
  }
  func.func @transform_3(%arg0: i32) -> (i32, i32) {
    %c0_i32 = arith.constant 0 : i32
    %c0_i32_0 = arith.constant 0 : i32
    return %arg0, %c0_i32 : i32, i32
  }
  func.func @transform_4(%arg0: i32) -> (i32, i32) {
    %c0_i32 = arith.constant 0 : i32
    %c0_i32_0 = arith.constant 0 : i32
    return %arg0, %c0_i32 : i32, i32
  }
}

</mosaic_0001>

<llo_original>
// kernel: tpu_custom_call.1
$region0: #{tpu_custom_call.1}
  #allocation0 [shape = 'u32[]', space=smem, size = 0x4, offset = 0x4, fixed_abs, tag = 'smem constant byte address 0x4 - core index']
  #allocation1 [shape = 'u32[72,128]{1,0:T(1,128)}', space=vmem, size = 0x9000, scoped, tag = 'internal scratch']
  %s0 = inlined_call_operand.hbm [shape: f32[8,32], index: 0, kind: input, shape index: {}]
  %s1 = inlined_call_operand.hbm [shape: f32[33,40], index: 1, kind: input, shape index: {}]
  %s2 = inlined_call_operand.hbm [shape: f32[33,33], index: 2, kind: input, shape index: {}]
  %s3 = inlined_call_operand.hbm [shape: f32[8,8], index: 3, kind: output, shape index: {0}]
  %s4 = inlined_call_operand.hbm [shape: f32[8,8], index: 4, kind: output, shape index: {1}]
  %5 = xla_tuple %s3, %s4
  %s6 = sld [smem:[#allocation0]]
  $region42: #{tpu_custom_call.1} parent=0
    _
  %s8 = ssub.s32 1, %s6
  %s9 = scalar_select 0, %s8, %s6
  $region1: #{tpu_custom_call.1} parent=0
    #allocation2 [shape = 'u8[4096]{0}', space=vmem, size = 0x1000, scoped, tag = 'input window, operand 0, single buffered']
    #allocation3 [shape = 's32[1]{0}', space=sflag, size = 0x4, scoped, tag = 'scoped memory for tpu_custom_call.1']
    #allocation4 [shape = 's32[1]{0}', space=sflag, size = 0x4, scoped, tag = 'scoped memory for tpu_custom_call.1']
    #allocation5 [shape = 'u8[20480]{0}', space=vmem, size = 0x5000, scoped, tag = 'input window, operand 1, single buffered']
    #allocation6 [shape = 's32[1]{0}', space=sflag, size = 0x4, scoped, tag = 'scoped memory for tpu_custom_call.1']
    #allocation7 [shape = 'u8[20480]{0}', space=vmem, size = 0x5000, scoped, tag = 'input window, operand 2, single buffered']
    #allocation8 [shape = 'u8[4096]{0}', space=vmem, size = 0x1000, scoped, tag = 'output window, operand 0, single buffered']
    #allocation9 [shape = 'u8[4096]{0}', space=vmem, size = 0x1000, scoped, tag = 'output window, operand 1, single buffered']
    #allocation10 [shape = 's32[1]{0}', space=sflag, size = 0x4, scoped, tag = 'scoped memory for tpu_custom_call.1']
    %10 = vsyncpa [#allocation3], 0
    %11 = vsyncpa [#allocation6], 0
    %12 = vsyncpa [#allocation4], 0
    %13 = vsyncpa [#allocation10], 0
    // Predicated region
    $region2: #{tpu_custom_call.1} parent=1 // pred_check
      _
    $region3: #{tpu_custom_call.1} parent=1 // pred_check_branch
      %15 = sbr.rel (0) target = $region5
    $region4: #{tpu_custom_call.1} parent=1 // pred_region
      %17 = vsyncadd [#allocation3], 0
      %s19 = sshll.u32 %s0, 4
      %s20 = int_to_ptr.hbm [resolvable:$true] %s19
      %s21 = sshll.u32 [#allocation2], 4
      %s22 = int_to_ptr.vmem [resolvable:$true] %s21
      %24 = dma.hbm_to_vmem [thread:$0]  %s20, 128, %s22, [#allocation3]
    $region5: #{tpu_custom_call.1} parent=1 // pred_fallthru
      _
    // Predicated region
    $region6: #{tpu_custom_call.1} parent=1 // pred_check
      _
    $region7: #{tpu_custom_call.1} parent=1 // pred_check_branch
      %26 = sbr.rel (0) target = $region9
    $region8: #{tpu_custom_call.1} parent=1 // pred_region
      %28 = vsyncadd [#allocation6], 0
      %s29 = sshll.u32 %s1, 4
      %s30 = int_to_ptr.hbm [resolvable:$true] %s29
      %s31 = sshll.u32 [#allocation5], 4
      %s32 = int_to_ptr.vmem [resolvable:$true] %s31
      %37 = dma.hbm_to_vmem [thread:$0]  %s30, 640, %s32, [#allocation6], 128, 128, 8
    $region9: #{tpu_custom_call.1} parent=1 // pred_fallthru
      _
    // Predicated region
    $region10: #{tpu_custom_call.1} parent=1 // pred_check
      _
    $region11: #{tpu_custom_call.1} parent=1 // pred_check_branch
      %39 = sbr.rel (0) target = $region13
    $region12: #{tpu_custom_call.1} parent=1 // pred_region
      %41 = vsyncadd [#allocation6], 0
      %s42 = sshll.u32 %s2, 4
      %s43 = int_to_ptr.hbm [resolvable:$true] %s42
      %s44 = sshll.u32 [#allocation7], 4
      %s45 = int_to_ptr.vmem [resolvable:$true] %s44
      %50 = dma.hbm_to_vmem [thread:$0]  %s43, 640, %s45, [#allocation6], 128, 128, 8
    $region13: #{tpu_custom_call.1} parent=1 // pred_fallthru
      _
    // Predicated region
    $region14: #{tpu_custom_call.1} parent=1 // pred_check
      _
    $region15: #{tpu_custom_call.1} parent=1 // pred_check_branch
      %52 = sbr.rel (0) target = $region17
    $region16: #{tpu_custom_call.1} parent=1 // pred_region
      %54 = dma.done [#allocation3], 128
    $region17: #{tpu_custom_call.1} parent=1 // pred_fallthru
      _
    // Predicated region
    $region18: #{tpu_custom_call.1} parent=1 // pred_check
      _
    $region19: #{tpu_custom_call.1} parent=1 // pred_check_branch
      %56 = sbr.rel (0) target = $region21
    $region20: #{tpu_custom_call.1} parent=1 // pred_region
      %58 = dma.done [#allocation6], 640
    $region21: #{tpu_custom_call.1} parent=1 // pred_fallthru
      _
    // Predicated region
    $region22: #{tpu_custom_call.1} parent=1 // pred_check
      _
    $region23: #{tpu_custom_call.1} parent=1 // pred_check_branch
      %60 = sbr.rel (0) target = $region25
    $region24: #{tpu_custom_call.1} parent=1 // pred_region
      %62 = dma.done [#allocation6], 640
    $region25: #{tpu_custom_call.1} parent=1 // pred_fallthru
      _
    %v63 = vld [vmem:[#allocation2] sm:$0xff]
    %v64 = vld [vmem:[#allocation5] sm:$0xff]
    %v65 = vld [vmem:[#allocation5 + $0x8] sm:$0xff]
    %v66 = vld [vmem:[#allocation5 + $0x10] sm:$0xff]
    %v67 = vld [vmem:[#allocation5 + $0x18] sm:$0xff]
    %v68 = vld [vmem:[#allocation5 + $0x20] sm:$0x1]
    %v69 = vperm.slane %v68, 0
    %vm70 = vcmask 261120
    %v72 = vsel %vm70, %v63, 0
    %74 = vmatpush.msra.mxu0 0.0
    %75 = vmatpush.msra.mxu0 0.0
    %76 = vmatpush.msra.mxu0 0.0
    %77 = vmatpush.msra.mxu0 0.0
    %78 = vmatpush.msra.mxu0 0.0
    %79 = vmatpush.msra.mxu0 0.0
    %80 = vmatpush.msra.mxu0 0.0
    %81 = vmatpush.msra.mxu0 0.0
    %82 = vmatpush.msra.mxu0 0.0
    %83 = vmatpush.msra.mxu0 0.0
    %84 = vmatpush.msra.mxu0 0.0
    %85 = vmatpush.msra.mxu0 0.0
    %86 = vmatpush.msra.mxu0 %v67
    %87 = vmatpush.msra.mxu0 %v66
    %88 = vmatpush.msra.mxu0 %v65
    %89 = vmatpush.msra.mxu0 %v64
    %90 = vmatmul.f32.gmra.mxu0 %v72
    %v91 = vpop.f32.mrf.mxu0
    %v92 = vadd.f32 %v69, %v91
    %93 = vdwg.mxu0
    %v94 = vmax.f32 %v92, 0.0
    %v95 = vld [vmem:[#allocation7] sm:$0xff]
    %v96 = vld [vmem:[#allocation7 + $0x8] sm:$0xff]
    %v97 = vld [vmem:[#allocation7 + $0x10] sm:$0xff]
    %v98 = vld [vmem:[#allocation7 + $0x18] sm:$0xff]
    %v99 = vld [vmem:[#allocation7 + $0x20] sm:$0x1]
    %v100 = vperm.slane %v99, 0
    %v102 = vsel %vm70, %v94, 0
    %104 = vmatpush.msra.mxu0 0.0
    %105 = vmatpush.msra.mxu0 0.0
    %106 = vmatpush.msra.mxu0 0.0
    %107 = vmatpush.msra.mxu0 0.0
    %108 = vmatpush.msra.mxu0 0.0
    %109 = vmatpush.msra.mxu0 0.0
    %110 = vmatpush.msra.mxu0 0.0
    %111 = vmatpush.msra.mxu0 0.0
    %112 = vmatpush.msra.mxu0 0.0
    %113 = vmatpush.msra.mxu0 0.0
    %114 = vmatpush.msra.mxu0 0.0
    %115 = vmatpush.msra.mxu0 0.0
    %116 = vmatpush.msra.mxu0 %v98
    %117 = vmatpush.msra.mxu0 %v97
    %118 = vmatpush.msra.mxu0 %v96
    %119 = vmatpush.msra.mxu0 %v95
    %120 = vmatmul.f32.gmra.mxu0 %v102
    %v121 = vpop.f32.mrf.mxu0
    %v122 = vadd.f32 %v100, %v121
    %123 = vdwg.mxu0
    %v124 = vmax.f32 %v122, 0.0
    %129 = vrot.lane.b32.xlu0 %v95, 96
    %v130 = vpop.permute.xlu0 %129
    %131 = vrot.lane.b32.xlu0 %v96, 96
    %v132 = vpop.permute.xlu0 %131
    %133 = vrot.lane.b32.xlu0 %v97, 96
    %v134 = vpop.permute.xlu0 %133
    %135 = vrot.lane.b32.xlu0 %v98, 96
    %v136 = vpop.permute.xlu0 %135
    %142 = vrot.lane.b32.xlu0 %v100, 96
    %v143 = vpop.permute.xlu0 %142
    %v146 = vsel %vm70, %v124, 0
    %148 = vmatpush.msra.mxu0 0.0
    %149 = vmatpush.msra.mxu0 0.0
    %150 = vmatpush.msra.mxu0 0.0
    %151 = vmatpush.msra.mxu0 0.0
    %152 = vmatpush.msra.mxu0 0.0
    %153 = vmatpush.msra.mxu0 0.0
    %154 = vmatpush.msra.mxu0 0.0
    %155 = vmatpush.msra.mxu0 0.0
    %156 = vmatpush.msra.mxu0 0.0
    %157 = vmatpush.msra.mxu0 0.0
    %158 = vmatpush.msra.mxu0 0.0
    %159 = vmatpush.msra.mxu0 0.0
    %160 = vmatpush.msra.mxu0 %v136
    %161 = vmatpush.msra.mxu0 %v134
    %162 = vmatpush.msra.mxu0 %v132
    %163 = vmatpush.msra.mxu0 %v130
    %164 = vmatmul.f32.gmra.mxu0 %v146
    %v165 = vpop.f32.mrf.mxu0
    %v166 = vadd.f32 %v143, %v165
    %167 = vdwg.mxu0
    %169 = vset.pattern.permute.xlu0 0
    %170 = vperm.xlu0 %169, %v166
    %v171 = vpop.permute.xlu0 %170
    %vm173 = vcmask 64512
    %174 = vst.msk [vmem:[#allocation8] sm:$0xff] %vm173, %v171
    %vm175 = vcmask 326912
    %v176 = vsel %vm175, %v92, -inf
    %177 = vmax.xlane.f32.xlu0 %v176
    %v178 = vpop.xlane.xlu0 %177
    %v179 = vsub.f32 %v92, %v178
    %v180 = vmul.f32 %v179, 1.442695
    %v181 = vpow.pop %v180
    %183 = vrot.lane.b32.xlu0 %v181, 96
    %v184 = vpop.permute.xlu0 %183
    %v186 = vsel %vm173, %v184, 0.0
    %187 = vadd.xlane.f32.xlu0 %v186
    %v188 = vpop.xlane.xlu0 %187
    %v189 = vrcp.pop %v188
    %v190 = vmul.f32 %v181, %v189
    %192 = vrot.lane.b32.xlu0 %v190, 96
    %v193 = vpop.permute.xlu0 %192
    %195 = vst.msk [vmem:[#allocation9] sm:$0xff] %vm173, %v193
    // Predicated region
    $region26: #{tpu_custom_call.1} parent=1 // pred_check
      _
    $region27: #{tpu_custom_call.1} parent=1 // pred_check_branch
      %197 = sbr.rel (0) target = $region29
    $region28: #{tpu_custom_call.1} parent=1 // pred_region
      %199 = vsyncadd [#allocation4], 0
      %s201 = sshll.u32 [#allocation8], 4
      %s202 = int_to_ptr.vmem [resolvable:$true] %s201
      %s203 = sshll.u32 %s3, 4
      %s204 = int_to_ptr.hbm [resolvable:$true] %s203
      %206 = dma.vmem_to_hbm [thread:$0]  %s202, 128, %s204, [#allocation4]
    $region29: #{tpu_custom_call.1} parent=1 // pred_fallthru
      _
    // Predicated region
    $region30: #{tpu_custom_call.1} parent=1 // pred_check
      _
    $region31: #{tpu_custom_call.1} parent=1 // pred_check_branch
      %208 = sbr.rel (0) target = $region33
    $region32: #{tpu_custom_call.1} parent=1 // pred_region
      %210 = vsyncadd [#allocation10], 0
      %s212 = sshll.u32 [#allocation9], 4
      %s213 = int_to_ptr.vmem [resolvable:$true] %s212
      %s214 = sshll.u32 %s4, 4
      %s215 = int_to_ptr.hbm [resolvable:$true] %s214
      %217 = dma.vmem_to_hbm [thread:$0]  %s213, 128, %s215, [#allocation10]
    $region33: #{tpu_custom_call.1} parent=1 // pred_fallthru
      _
    // Predicated region
    $region34: #{tpu_custom_call.1} parent=1 // pred_check
      _
    $region35: #{tpu_custom_call.1} parent=1 // pred_check_branch
      %219 = sbr.rel (0) target = $region37
    $region36: #{tpu_custom_call.1} parent=1 // pred_region
      %221 = dma.done [#allocation4], 128
    $region37: #{tpu_custom_call.1} parent=1 // pred_fallthru
      _
    // Predicated region
    $region38: #{tpu_custom_call.1} parent=1 // pred_check
      _
    $region39: #{tpu_custom_call.1} parent=1 // pred_check_branch
      %223 = sbr.rel (0) target = $region41
    $region40: #{tpu_custom_call.1} parent=1 // pred_region
      %225 = dma.done [#allocation10], 128
    $region41: #{tpu_custom_call.1} parent=1 // pred_fallthru
      _
    %226 = vsyncpa [#allocation3], 1
    %227 = vsyncpa [#allocation6], 1
    %228 = vsyncpa [#allocation4], 1
    %229 = vsyncpa [#allocation10], 1

</llo_original>
